<compile_context>
chip_gen: v7x
topology: tpu7x:2x2x1
jax: 0.10.0
libtpu: 0.0.40
codegen_flags: <defaults>
</compile_context>

<pallas_src>
import functools

import jax
import jax.numpy as jnp
from jax.experimental import pallas as pl
from jax.experimental.pallas import tpu as pltpu


def _round_up(x, m):
    return (x + m - 1) // m * m


# ------------------------------ Pallas kernel ------------------------------ #

def _make_conv_bn_relu_kernel(relu6):
    """One im2col MXU dot + folded BN + ReLU/ReLU6, fused per pixel tile."""

    def kernel(p_ref, w_ref, scale_ref, bias_ref, out_ref):
        # p_ref     : (tm, K)      bf16   streamed tile of im2col patches
        # w_ref     : (K, Cout)    bf16   VMEM resident
        # scale_ref : (1, Cout)    f32    VMEM resident (folded BN scale)
        # bias_ref  : (1, Cout)    f32    VMEM resident (folded BN bias)
        acc = jnp.dot(p_ref[...], w_ref[...],
                      preferred_element_type=jnp.float32)
        y = acc * scale_ref[...] + bias_ref[...]
        y = jnp.maximum(y, 0.0)
        if relu6:
            y = jnp.minimum(y, 6.0)
        out_ref[...] = y.astype(out_ref.dtype)

    return kernel


# -------------------------------- JAX glue --------------------------------- #

def _im2col(x_nhwc, kh, kw, stride, padding):
    """Window taps stacked on the inner axis: ((N*Ho*Wo, kh*kw*C), Ho, Wo)."""
    N, H, W, C = x_nhwc.shape
    Ho = (H + 2 * padding - kh) // stride + 1
    Wo = (W + 2 * padding - kw) // stride + 1
    xp = jnp.pad(x_nhwc, ((0, 0), (padding, padding), (padding, padding), (0, 0)))
    taps = []
    for i in range(kh):
        for j in range(kw):
            taps.append(jax.lax.slice(
                xp,
                (0, i, j, 0),
                (N, i + stride * (Ho - 1) + 1, j + stride * (Wo - 1) + 1, C),
                (1, stride, stride, 1)))
    patches = jnp.stack(taps, axis=3)                 # (N, Ho, Wo, kh*kw, C)
    return patches.reshape(N * Ho * Wo, kh * kw * C), Ho, Wo


def conv_bn_relu_forward(x_nchw, params, *, stride=1, padding=0, relu6=False,
                         eps=1e-5, tm=1024):
    """PyTorch-facing forward of _ConvBNReLU.

    x_nchw : (N, Cin, H, W) float32 NCHW (like nn.Conv2d input).
    params : w (Cout, Cin, KH, KW) OIHW; bn_{gamma,beta,mean,var} (Cout,).
    Returns (N, Cout, Ho, Wo) float32.
    """
    w = params["w"]
    Cout, Cin_w, KH, KW = w.shape
    N, Cin, H, W = x_nchw.shape
    assert Cin == Cin_w, "groups != 1 not supported"

    # NCHW -> NHWC; cast to bf16 ONCE so the KH*KW patch expansion in HBM is
    # half-width and the MXU gets bf16 operands.
    x = jnp.transpose(x_nchw, (0, 2, 3, 1)).astype(jnp.bfloat16)
    patches, Ho, Wo = _im2col(x, KH, KW, stride, padding)
    M, K = patches.shape                               # K = KH*KW*Cin

    # Pixel-axis tiling: multiple of 16 rows (bf16 sublane packing); shrink tm
    # until a double-buffered (patch tile + out tile) stays well inside v7x's
    # ~32 MiB scoped VMEM (weights / scale / bias are small and resident).
    tm = min(tm, _round_up(M, 16))
    while tm > 16 and 2 * tm * (K * 2 + Cout * 4) > 16 * 1024 * 1024:
        tm = _round_up(tm // 2, 16)
    M_pad = _round_up(M, tm)
    if M_pad != M:
        patches = jnp.pad(patches, ((0, M_pad - M), (0, 0)))

    # OIHW -> (KH*KW*Cin, Cout) bf16, matching the (kh, kw, cin) patch order.
    w_mat = jnp.transpose(w, (2, 3, 1, 0)).reshape(K, Cout).astype(jnp.bfloat16)

    # Fold inference BatchNorm into per-channel scale/bias (kept f32).
    scale = (params["bn_gamma"] / jnp.sqrt(params["bn_var"] + eps)).astype(jnp.float32)
    bias = (params["bn_beta"] - params["bn_mean"] * scale).astype(jnp.float32)

    out = pl.pallas_call(
        _make_conv_bn_relu_kernel(relu6),
        out_shape=jax.ShapeDtypeStruct((M_pad, Cout), jnp.float32),
        grid=(M_pad // tm,),
        in_specs=[
            pl.BlockSpec((tm, K), lambda i: (i, 0)),        # streamed patch tiles
            pl.BlockSpec((K, Cout), lambda i: (0, 0)),      # VMEM resident
            pl.BlockSpec((1, Cout), lambda i: (0, 0)),
            pl.BlockSpec((1, Cout), lambda i: (0, 0)),
        ],
        out_specs=pl.BlockSpec((tm, Cout), lambda i: (i, 0)),
        compiler_params=pltpu.CompilerParams(
            dimension_semantics=("parallel",),              # megacore sharding
            vmem_limit_bytes=32 * 1024 * 1024),
    )(patches, w_mat, scale.reshape(1, Cout), bias.reshape(1, Cout))

    out = out[:M].reshape(N, Ho, Wo, Cout)
    return jnp.transpose(out, (0, 3, 1, 2))                 # back to NCHW float32


# ---------------------------- pure-JAX reference ---------------------------- #

def ref_forward(x_nchw, params, *, stride=1, padding=0, relu6=False, eps=1e-5):
    dn = ("NCHW", "OIHW", "NCHW")
    y = jax.lax.conv_general_dilated(
        x_nchw, params["w"], (stride, stride),
        ((padding, padding), (padding, padding)),
        dimension_numbers=dn, precision=jax.lax.Precision.HIGHEST)
    scale = params["bn_gamma"] / jnp.sqrt(params["bn_var"] + eps)
    bias = params["bn_beta"] - params["bn_mean"] * scale
    y = y * scale[None, :, None, None] + bias[None, :, None, None]
    y = jnp.maximum(y, 0.0)
    if relu6:
        y = jnp.minimum(y, 6.0)
    return y


# ----------------------------------- main ----------------------------------- #

if __name__ == "__main__":
    key = jax.random.PRNGKey(0)

    def make_params(k, cout, cin, ksz):
        ks = jax.random.split(k, 5)
        return dict(
            w=0.1 * jax.random.normal(ks[0], (cout, cin, ksz, ksz), jnp.float32),
            bn_gamma=jax.random.normal(ks[1], (cout,), jnp.float32),
            bn_beta=jax.random.normal(ks[2], (cout,), jnp.float32),
            bn_mean=0.1 * jax.random.normal(ks[3], (cout,), jnp.float32),
            bn_var=jnp.abs(jax.random.normal(ks[4], (cout,), jnp.float32)) + 0.5,
        )

    def check(x, params, **kw):
        fwd = jax.jit(functools.partial(conv_bn_relu_forward, **kw))
        out = jax.block_until_ready(fwd(x, params))
        ref_kw = {k: v for k, v in kw.items() if k != "tm"}
        ref = ref_forward(x, params, **ref_kw)
        assert out.shape == ref.shape, (out.shape, ref.shape)
        err = float(jnp.max(jnp.abs(out - ref)))
        tol = 3e-2 * max(1.0, float(jnp.max(jnp.abs(ref))))
        if err > tol:
            raise AssertionError(f"kernel/reference mismatch: {err} > {tol}")

    k0, k1, k2, k3 = jax.random.split(key, 4)

    # 3x3 / stride-2 / pad-1 downsampling ConvBNReLU (bisenetv1-style usage).
    x1 = jax.random.normal(k0, (2, 4, 16, 16), jnp.float32)
    check(x1, make_params(k1, 32, 4, 3), stride=2, padding=1, relu6=False)

    # 3x3 / stride-1 / pad-1, odd spatial size (exercises remainder padding),
    # ReLU6, small tm so the pixel grid has multiple pipelined tiles.
    x2 = jax.random.normal(k2, (2, 8, 17, 17), jnp.float32)
    check(x2, make_params(k3, 48, 8, 3), stride=1, padding=1, relu6=True, tm=256)

    print("KERNEL_OK")
</pallas_src>

<mosaic_0001>
module attributes {stable_mosaic.version = 11 : i64} {
  func.func @kernel(%arg0: i32, %arg1: memref<128x36xbf16, #tpu.memory_space<vmem>>, %arg2: memref<36x32xbf16, #tpu.memory_space<vmem>>, %arg3: memref<1x32xf32, #tpu.memory_space<vmem>>, %arg4: memref<1x32xf32, #tpu.memory_space<vmem>>, %arg5: memref<128x32xf32, #tpu.memory_space<vmem>>) attributes {dimension_semantics = [#tpu.dimension_semantics<parallel>], iteration_bounds = array<i64: 1>, scalar_prefetch = 0 : i64, scratch_operands = 0 : i64, tpu.core_type = #tpu.core_type<tc>, window_params = [{transform_indices = @transform_0, window_bounds = array<i64: 128, 36>}, {pipeline_mode = #tpu.pipeline_mode<synchronous>, transform_indices = @transform_1, window_bounds = array<i64: 36, 32>}, {pipeline_mode = #tpu.pipeline_mode<synchronous>, transform_indices = @transform_2, window_bounds = array<i64: 1, 32>}, {pipeline_mode = #tpu.pipeline_mode<synchronous>, transform_indices = @transform_3, window_bounds = array<i64: 1, 32>}, {transform_indices = @transform_4, window_bounds = array<i64: 128, 32>}]} {
    %c0 = arith.constant 0 : index
    %c0_0 = arith.constant 0 : index
    %0 = vector.load %arg1[%c0, %c0_0] : memref<128x36xbf16, #tpu.memory_space<vmem>>, vector<128x36xbf16>
    %c0_1 = arith.constant 0 : index
    %c0_2 = arith.constant 0 : index
    %1 = vector.load %arg2[%c0_1, %c0_2] : memref<36x32xbf16, #tpu.memory_space<vmem>>, vector<36x32xbf16>
    %cst = arith.constant dense<0.000000e+00> : vector<128x32xf32>
    %2 = tpu.matmul %0, %1, %cst {dimension_numbers = #tpu.dot_dimension_numbers<[1], [0], [0], [1], [0, 0, 1, 1], [], []>} : vector<128x36xbf16>, vector<36x32xbf16>, vector<128x32xf32> -> vector<128x32xf32>
    %c0_3 = arith.constant 0 : index
    %c0_4 = arith.constant 0 : index
    %3 = vector.load %arg3[%c0_3, %c0_4] : memref<1x32xf32, #tpu.memory_space<vmem>>, vector<1x32xf32>
    %4 = vector.broadcast %3 : vector<1x32xf32> to vector<128x32xf32>
    %5 = arith.mulf %2, %4 : vector<128x32xf32>
    %c0_5 = arith.constant 0 : index
    %c0_6 = arith.constant 0 : index
    %6 = vector.load %arg4[%c0_5, %c0_6] : memref<1x32xf32, #tpu.memory_space<vmem>>, vector<1x32xf32>
    %7 = vector.broadcast %6 : vector<1x32xf32> to vector<128x32xf32>
    %8 = arith.addf %5, %7 : vector<128x32xf32>
    %cst_7 = arith.constant 0.000000e+00 : f32
    %9 = vector.broadcast %cst_7 : f32 to vector<128x32xf32>
    %10 = arith.maximumf %8, %9 : vector<128x32xf32>
    %c0_8 = arith.constant 0 : index
    %c0_9 = arith.constant 0 : index
    %11 = vector.load %arg5[%c0_8, %c0_9] : memref<128x32xf32, #tpu.memory_space<vmem>>, vector<128x32xf32>
    tpu.vector_store %arg5[%c0_8, %c0_9], %10 {strides = array<i32>} : memref<128x32xf32, #tpu.memory_space<vmem>>, vector<128x32xf32>,
    return
  }
  func.func @transform_0(%arg0: i32) -> (i32, i32) {
    %c0_i32 = arith.constant 0 : i32
    %c0_i32_0 = arith.constant 0 : i32
    return %arg0, %c0_i32 : i32, i32
  }
  func.func @transform_1(%arg0: i32) -> (i32, i32) {
    %c0_i32 = arith.constant 0 : i32
    %c0_i32_0 = arith.constant 0 : i32
    %c0_i32_1 = arith.constant 0 : i32
    return %c0_i32, %c0_i32_0 : i32, i32
  }
  func.func @transform_2(%arg0: i32) -> (i32, i32) {
    %c0_i32 = arith.constant 0 : i32
    %c0_i32_0 = arith.constant 0 : i32
    %c0_i32_1 = arith.constant 0 : i32
    return %c0_i32, %c0_i32_0 : i32, i32
  }
  func.func @transform_3(%arg0: i32) -> (i32, i32) {
    %c0_i32 = arith.constant 0 : i32
    %c0_i32_0 = arith.constant 0 : i32
    %c0_i32_1 = arith.constant 0 : i32
    return %c0_i32, %c0_i32_0 : i32, i32
  }
  func.func @transform_4(%arg0: i32) -> (i32, i32) {
    %c0_i32 = arith.constant 0 : i32
    %c0_i32_0 = arith.constant 0 : i32
    return %arg0, %c0_i32 : i32, i32
  }
}

</mosaic_0001>

<llo_original>
// kernel: conv_bn_relu_forward.1
$region0: #{conv_bn_relu_forward.1}
  #allocation0 [shape = 'u32[]', space=smem, size = 0x4, offset = 0x4, fixed_abs, tag = 'smem constant byte address 0x4 - core index']
  #allocation1 [shape = 'u32[144,128]{1,0:T(1,128)}', space=vmem, size = 0x12000, scoped, tag = 'internal scratch']
  %s0 = inlined_call_operand.vmem [shape: bf16[128,36], index: 0, kind: input, shape index: {}]
  %s1 = inlined_call_operand.vmem [shape: bf16[36,32], index: 1, kind: input, shape index: {}]
  %s2 = inlined_call_operand.vmem [shape: f32[1,32], index: 2, kind: input, shape index: {}]
  %s3 = inlined_call_operand.vmem [shape: f32[1,32], index: 3, kind: input, shape index: {}]
  %s4 = inlined_call_operand.hbm [shape: f32[128,32], index: 4, kind: output, shape index: {}]
  %s5 = sld [smem:[#allocation0]]
  $region26: #{conv_bn_relu_forward.1} parent=0
    _
  %s7 = ssub.s32 1, %s5
  %s8 = scalar_select 0, %s7, %s5
  $region1: #{conv_bn_relu_forward.1} parent=0
    #allocation2 [shape = 'u8[65536]{0}', space=vmem, size = 0x10000, scoped, tag = 'output window, operand 0, single buffered']
    #allocation3 [shape = 's32[1]{0}', space=sflag, size = 0x4, scoped, tag = 'scoped memory for conv_bn_relu_forward.1']
    %9 = vsyncpa [#allocation3], 0
    // Predicated region
    $region2: #{conv_bn_relu_forward.1} parent=1 // pred_check
      _
    $region3: #{conv_bn_relu_forward.1} parent=1 // pred_check_branch
      %11 = sbr.rel (0) target = $region5
    $region4: #{conv_bn_relu_forward.1} parent=1 // pred_region
      _
    $region5: #{conv_bn_relu_forward.1} parent=1 // pred_fallthru
      _
    // Predicated region
    $region6: #{conv_bn_relu_forward.1} parent=1 // pred_check
      _
    $region7: #{conv_bn_relu_forward.1} parent=1 // pred_check_branch
      %13 = sbr.rel (0) target = $region9
    $region8: #{conv_bn_relu_forward.1} parent=1 // pred_region
      _
    $region9: #{conv_bn_relu_forward.1} parent=1 // pred_fallthru
      _
    // Predicated region
    $region10: #{conv_bn_relu_forward.1} parent=1 // pred_check
      _
    $region11: #{conv_bn_relu_forward.1} parent=1 // pred_check_branch
      %15 = sbr.rel (0) target = $region13
    $region12: #{conv_bn_relu_forward.1} parent=1 // pred_region
      _
    $region13: #{conv_bn_relu_forward.1} parent=1 // pred_fallthru
      _
    // Predicated region
    $region14: #{conv_bn_relu_forward.1} parent=1 // pred_check
      _
    $region15: #{conv_bn_relu_forward.1} parent=1 // pred_check_branch
      %17 = sbr.rel (0) target = $region17
    $region16: #{conv_bn_relu_forward.1} parent=1 // pred_region
      _
    $region17: #{conv_bn_relu_forward.1} parent=1 // pred_fallthru
      _
    %v19 = vld [vmem:[%s0] sm:$0xf]
    %v20 = vld [vmem:[%s0 + $0x4] sm:$0xf]
    %v21 = vld [vmem:[%s0 + $0x8] sm:$0xf]
    %v22 = vld [vmem:[%s0 + $0xc] sm:$0xf]
    %v23 = vld [vmem:[%s0 + $0x10] sm:$0xf]
    %v24 = vld [vmem:[%s0 + $0x14] sm:$0xf]
    %v25 = vld [vmem:[%s0 + $0x18] sm:$0xf]
    %v26 = vld [vmem:[%s0 + $0x1c] sm:$0xf]
    %v27 = vld [vmem:[%s0 + $0x20] sm:$0xf]
    %v28 = vld [vmem:[%s0 + $0x24] sm:$0xf]
    %v29 = vld [vmem:[%s0 + $0x28] sm:$0xf]
    %v30 = vld [vmem:[%s0 + $0x2c] sm:$0xf]
    %v31 = vld [vmem:[%s0 + $0x30] sm:$0xf]
    %v32 = vld [vmem:[%s0 + $0x34] sm:$0xf]
    %v33 = vld [vmem:[%s0 + $0x38] sm:$0xf]
    %v34 = vld [vmem:[%s0 + $0x3c] sm:$0xf]
    %v35 = vld [vmem:[%s1] sm:$0xf]
    %v36 = vld [vmem:[%s1 + $0x4] sm:$0xf]
    %v37 = vld [vmem:[%s1 + $0x8] sm:$0xf]
    %v38 = vld [vmem:[%s1 + $0xc] sm:$0xf]
    %v39 = vld [vmem:[%s1 + $0x10] sm:$0x3]
    %v56 = vunpack.c.l.b16 %v19
    %v57 = vunpack.c.l.b16 %v20
    %v58 = vunpack.c.l.b16 %v21
    %v59 = vunpack.c.l.b16 %v22
    %v60 = vunpack.c.l.b16 %v23
    %v61 = vunpack.c.l.b16 %v24
    %v62 = vunpack.c.l.b16 %v25
    %v63 = vunpack.c.l.b16 %v26
    %v64 = vunpack.c.l.b16 %v27
    %v65 = vunpack.c.l.b16 %v28
    %v66 = vunpack.c.l.b16 %v29
    %v67 = vunpack.c.l.b16 %v30
    %v68 = vunpack.c.l.b16 %v31
    %v69 = vunpack.c.l.b16 %v32
    %v70 = vunpack.c.l.b16 %v33
    %v71 = vunpack.c.l.b16 %v34
    %v72 = vpack.c.b16 %v57, %v56
    %v73 = vpack.c.b16 %v59, %v58
    %v74 = vpack.c.b16 %v61, %v60
    %v75 = vpack.c.b16 %v63, %v62
    %v76 = vpack.c.b16 %v65, %v64
    %v77 = vpack.c.b16 %v67, %v66
    %v78 = vpack.c.b16 %v69, %v68
    %v79 = vpack.c.b16 %v71, %v70
    %v85 = vunpack.c.l.b16 %v35
    %v86 = vunpack.c.l.b16 %v36
    %v87 = vunpack.c.l.b16 %v37
    %v88 = vunpack.c.l.b16 %v38
    %v89 = vunpack.c.l.b16 %v39
    %v90 = vpack.c.b16 %v86, %v85
    %v91 = vpack.c.b16 %v88, %v87
    %v92 = vpack.c.b16 %v89, %v89
    %vm95 = vcmask 293888
    %v97 = vsel %vm95, %v72, 0
    %v100 = vsel %vm95, %v73, 0
    %v103 = vsel %vm95, %v74, 0
    %v106 = vsel %vm95, %v75, 0
    %v109 = vsel %vm95, %v76, 0
    %v112 = vsel %vm95, %v77, 0
    %v115 = vsel %vm95, %v78, 0
    %v118 = vsel %vm95, %v79, 0
    %vm120 = vcmask 1041408
    %v122 = vsel %vm120, %v92, 0
    %124 = vmatprep.subr.bf16.mxu0 0
    %125 = vmatpush1.bf16.msra.mxu0 %v90
    %126 = vmatprep.subr.bf16.mxu0 0
    %127 = vmatpush1.bf16.msra.mxu0 %v91
    %128 = vmatprep.subr.bf16.mxu0 0
    %129 = vmatpush1.bf16.msra.mxu0 %v122
    %130 = vmatprep.subr.bf16.mxu0 0
    %131 = vmatpush1.bf16.msra.mxu0 0
    %132 = vmatprep.subr.bf16.mxu0 0
    %133 = vmatpush1.bf16.msra.mxu0 0
    %134 = vmatprep.subr.bf16.mxu0 0
    %135 = vmatpush1.bf16.msra.mxu0 0
    %136 = vmatprep.subr.bf16.mxu0 0
    %137 = vmatpush1.bf16.msra.mxu0 0
    %138 = vmatprep.subr.bf16.mxu0 0
    %139 = vmatpush1.bf16.msra.mxu0 0
    %140 = vmatprep.subr.bf16.mxu0 0
    %141 = vmatpush1.bf16.msra.mxu0 0
    %142 = vmatprep.subr.bf16.mxu0 0
    %143 = vmatpush1.bf16.msra.mxu0 0
    %144 = vmatprep.subr.bf16.mxu0 0
    %145 = vmatpush1.bf16.msra.mxu0 0
    %146 = vmatprep.subr.bf16.mxu0 0
    %147 = vmatpush1.bf16.msra.mxu0 0
    %148 = vmatprep.subr.bf16.mxu0 0
    %149 = vmatpush1.bf16.msra.mxu0 0
    %150 = vmatprep.subr.bf16.mxu0 0
    %151 = vmatpush1.bf16.msra.mxu0 0
    %152 = vmatprep.subr.bf16.mxu0 0
    %153 = vmatpush1.bf16.msra.mxu0 0
    %154 = vmatprep.subr.bf16.mxu0 0
    %155 = vmatpush1.bf16.msra.mxu0 0
    %156 = vmatprep.mubr.bf16.mxu0 0
    %157 = vmatmul.mubr.bf16.gmra.mrb[0].mxu0 %v97
    %v158 = vpop.f32.mrb[0].mxu0
    %v159 = vadd.f32 0.0, %v158
    %v160 = vpop.f32.mrb[0].mxu0
    %v161 = vpop.f32.mrb[0].mxu0
    %v162 = vadd.f32 0.0, %v161
    %v163 = vpop.f32.mrb[0].mxu0
    %164 = vmatprep.mubr.bf16.mxu0 0
    %165 = vmatmul.mubr.bf16.gmra.mrb[0].mxu0 %v100
    %v166 = vpop.f32.mrb[0].mxu0
    %v167 = vadd.f32 0.0, %v166
    %v168 = vpop.f32.mrb[0].mxu0
    %v169 = vpop.f32.mrb[0].mxu0
    %v170 = vadd.f32 0.0, %v169
    %v171 = vpop.f32.mrb[0].mxu0
    %172 = vmatprep.mubr.bf16.mxu0 0
    %173 = vmatmul.mubr.bf16.gmra.mrb[0].mxu0 %v103
    %v174 = vpop.f32.mrb[0].mxu0
    %v175 = vadd.f32 0.0, %v174
    %v176 = vpop.f32.mrb[0].mxu0
    %v177 = vpop.f32.mrb[0].mxu0
    %v178 = vadd.f32 0.0, %v177
    %v179 = vpop.f32.mrb[0].mxu0
    %180 = vmatprep.mubr.bf16.mxu0 0
    %181 = vmatmul.mubr.bf16.gmra.mrb[0].mxu0 %v106
    %v182 = vpop.f32.mrb[0].mxu0
    %v183 = vadd.f32 0.0, %v182
    %v184 = vpop.f32.mrb[0].mxu0
    %v185 = vpop.f32.mrb[0].mxu0
    %v186 = vadd.f32 0.0, %v185
    %v187 = vpop.f32.mrb[0].mxu0
    %188 = vmatprep.mubr.bf16.mxu0 0
    %189 = vmatmul.mubr.bf16.gmra.mrb[0].mxu0 %v109
    %v190 = vpop.f32.mrb[0].mxu0
    %v191 = vadd.f32 0.0, %v190
    %v192 = vpop.f32.mrb[0].mxu0
    %v193 = vpop.f32.mrb[0].mxu0
    %v194 = vadd.f32 0.0, %v193
    %v195 = vpop.f32.mrb[0].mxu0
    %196 = vmatprep.mubr.bf16.mxu0 0
    %197 = vmatmul.mubr.bf16.gmra.mrb[0].mxu0 %v112
    %v198 = vpop.f32.mrb[0].mxu0
    %v199 = vadd.f32 0.0, %v198
    %v200 = vpop.f32.mrb[0].mxu0
    %v201 = vpop.f32.mrb[0].mxu0
    %v202 = vadd.f32 0.0, %v201
    %v203 = vpop.f32.mrb[0].mxu0
    %204 = vmatprep.mubr.bf16.mxu0 0
    %205 = vmatmul.mubr.bf16.gmra.mrb[0].mxu0 %v115
    %v206 = vpop.f32.mrb[0].mxu0
    %v207 = vadd.f32 0.0, %v206
    %v208 = vpop.f32.mrb[0].mxu0
    %v209 = vpop.f32.mrb[0].mxu0
    %v210 = vadd.f32 0.0, %v209
    %v211 = vpop.f32.mrb[0].mxu0
    %212 = vmatprep.mubr.bf16.mxu0 0
    %213 = vmatmul.mubr.bf16.gmra.mrb[0].mxu0 %v118
    %v214 = vpop.f32.mrb[0].mxu0
    %v215 = vadd.f32 0.0, %v214
    %v216 = vpop.f32.mrb[0].mxu0
    %v217 = vpop.f32.mrb[0].mxu0
    %v218 = vadd.f32 0.0, %v217
    %v219 = vpop.f32.mrb[0].mxu0
    %220 = vdwg.mxu0
    %v221 = vld [vmem:[%s2] sm:$0x1]
    %v223 = vlaneseq
    %v224 = vshrl.u32 %v223, 7
    %v225 = vsub.s32 0, %v224
    %v226 = vrot.slane %v221, %v225
    %v228 = vmul.f32 %v159, %v226
    %v229 = vmul.f32 %v162, %v226
    %v230 = vmul.f32 %v167, %v226
    %v231 = vmul.f32 %v170, %v226
    %v232 = vmul.f32 %v175, %v226
    %v233 = vmul.f32 %v178, %v226
    %v234 = vmul.f32 %v183, %v226
    %v235 = vmul.f32 %v186, %v226
    %v236 = vmul.f32 %v191, %v226
    %v237 = vmul.f32 %v194, %v226
    %v238 = vmul.f32 %v199, %v226
    %v239 = vmul.f32 %v202, %v226
    %v240 = vmul.f32 %v207, %v226
    %v241 = vmul.f32 %v210, %v226
    %v242 = vmul.f32 %v215, %v226
    %v243 = vmul.f32 %v218, %v226
    %v244 = vld [vmem:[%s3] sm:$0x1]
    %v246 = vlaneseq
    %v247 = vshrl.u32 %v246, 7
    %v248 = vsub.s32 0, %v247
    %v249 = vrot.slane %v244, %v248
    %v251 = vadd.f32 %v228, %v249
    %v252 = vadd.f32 %v229, %v249
    %v253 = vadd.f32 %v230, %v249
    %v254 = vadd.f32 %v231, %v249
    %v255 = vadd.f32 %v232, %v249
    %v256 = vadd.f32 %v233, %v249
    %v257 = vadd.f32 %v234, %v249
    %v258 = vadd.f32 %v235, %v249
    %v259 = vadd.f32 %v236, %v249
    %v260 = vadd.f32 %v237, %v249
    %v261 = vadd.f32 %v238, %v249
    %v262 = vadd.f32 %v239, %v249
    %v263 = vadd.f32 %v240, %v249
    %v264 = vadd.f32 %v241, %v249
    %v265 = vadd.f32 %v242, %v249
    %v266 = vadd.f32 %v243, %v249
    %v267 = vmax.f32 %v251, 0.0
    %v268 = vmax.f32 %v252, 0.0
    %v269 = vmax.f32 %v253, 0.0
    %v270 = vmax.f32 %v254, 0.0
    %v271 = vmax.f32 %v255, 0.0
    %v272 = vmax.f32 %v256, 0.0
    %v273 = vmax.f32 %v257, 0.0
    %v274 = vmax.f32 %v258, 0.0
    %v275 = vmax.f32 %v259, 0.0
    %v276 = vmax.f32 %v260, 0.0
    %v277 = vmax.f32 %v261, 0.0
    %v278 = vmax.f32 %v262, 0.0
    %v279 = vmax.f32 %v263, 0.0
    %v280 = vmax.f32 %v264, 0.0
    %v281 = vmax.f32 %v265, 0.0
    %v282 = vmax.f32 %v266, 0.0
    %vm283 = vcmask 261120
    %284 = vst.msk [vmem:[#allocation2] sm:$0xff] %vm283, %v267
    %285 = vst.msk [vmem:[#allocation2 + $0x8] sm:$0xff] %vm283, %v268
    %286 = vst.msk [vmem:[#allocation2 + $0x10] sm:$0xff] %vm283, %v269
    %287 = vst.msk [vmem:[#allocation2 + $0x18] sm:$0xff] %vm283, %v270
    %288 = vst.msk [vmem:[#allocation2 + $0x20] sm:$0xff] %vm283, %v271
    %289 = vst.msk [vmem:[#allocation2 + $0x28] sm:$0xff] %vm283, %v272
    %290 = vst.msk [vmem:[#allocation2 + $0x30] sm:$0xff] %vm283, %v273
    %291 = vst.msk [vmem:[#allocation2 + $0x38] sm:$0xff] %vm283, %v274
    %292 = vst.msk [vmem:[#allocation2 + $0x40] sm:$0xff] %vm283, %v275
    %293 = vst.msk [vmem:[#allocation2 + $0x48] sm:$0xff] %vm283, %v276
    %294 = vst.msk [vmem:[#allocation2 + $0x50] sm:$0xff] %vm283, %v277
    %295 = vst.msk [vmem:[#allocation2 + $0x58] sm:$0xff] %vm283, %v278
    %296 = vst.msk [vmem:[#allocation2 + $0x60] sm:$0xff] %vm283, %v279
    %297 = vst.msk [vmem:[#allocation2 + $0x68] sm:$0xff] %vm283, %v280
    %298 = vst.msk [vmem:[#allocation2 + $0x70] sm:$0xff] %vm283, %v281
    %299 = vst.msk [vmem:[#allocation2 + $0x78] sm:$0xff] %vm283, %v282
    // Predicated region
    $region18: #{conv_bn_relu_forward.1} parent=1 // pred_check
      _
    $region19: #{conv_bn_relu_forward.1} parent=1 // pred_check_branch
      %301 = sbr.rel (0) target = $region21
    $region20: #{conv_bn_relu_forward.1} parent=1 // pred_region
      %s303 = ssub.s32 2048, 2048
      %304 = vsyncadd [#allocation3], %s303
      %s305 = sshll.u32 [#allocation2], 4
      %s306 = int_to_ptr.vmem [resolvable:$true] %s305
      %311 = dma.vmem_to_hbm [thread:$0]  %s306, 2048, %s4, [#allocation3], 128, 128, 8
    $region21: #{conv_bn_relu_forward.1} parent=1 // pred_fallthru
      _
    // Predicated region
    $region22: #{conv_bn_relu_forward.1} parent=1 // pred_check
      _
    $region23: #{conv_bn_relu_forward.1} parent=1 // pred_check_branch
      %313 = sbr.rel (0) target = $region25
    $region24: #{conv_bn_relu_forward.1} parent=1 // pred_region
      %314 = dma.done [#allocation3], 2048
    $region25: #{conv_bn_relu_forward.1} parent=1 // pred_fallthru
      _
    %315 = vsyncpa [#allocation3], 1

</llo_original>
